<compile_context>
chip_gen: v5e
topology: v5e:2x2
jax: 0.10.0
libtpu: 0.0.40
codegen_flags: <defaults>
</compile_context>

<pallas_src>
import math

import jax
import jax.numpy as jnp
from jax import lax
from jax.experimental import pallas as pl
from jax.experimental.pallas import tpu as pltpu


# ----------------------------- Pallas kernel ------------------------------- #
def mlp_kernel(x_ref, w1_ref, b1_ref, w2_ref, b2_ref, w3_ref, b3_ref, o_ref):
    # Layer 1: h^T = W1 . x^T  — contract W1's last dim with x's last dim
    # (rhs-transposed matmul, no explicit XLU transpose materialized).
    h = lax.dot_general(
        w1_ref[...], x_ref[...],
        dimension_numbers=(((1,), (1,)), ((), ())),
        preferred_element_type=jnp.float32,
    )                                                   # (H, row_tile)
    h = jnp.maximum(h + b1_ref[...], 0.0)
    # Layer 2: linear + relu (lane dim = row_tile, dense).
    h = jnp.dot(w2_ref[...], h, preferred_element_type=jnp.float32)
    h = jnp.maximum(h + b2_ref[...], 0.0)
    # Layer 3 (output): linear, no activation.
    out = jnp.dot(w3_ref[...], h, preferred_element_type=jnp.float32)
    out = out + b3_ref[...]
    o_ref[...] = out.astype(o_ref.dtype)                # (F_out, row_tile)


def _choose_row_tile(M, max_row_tile):
    """Largest convenient row tile: single step for small M, else the largest
    multiple of 128 <= max_row_tile that divides M (no padding pass); falls
    back to max_row_tile (with padding) for ragged M."""
    if M <= max_row_tile:
        return ((M + 7) // 8) * 8
    cap = max(128, (max_row_tile // 128) * 128)
    for t in range(cap, 0, -128):
        if M % t == 0:
            return t
    return cap


def mlp_pallas(x, w1t, b1, w2t, b2, w3t, b3, *, max_row_tile=4096):
    """x: (num_classes, B, N, F_in) -> (num_classes, B, N, F_out).

    Weights are in torch nn.Linear orientation: w1t (H, F_in), w2t (H, H),
    w3t (F_out, H); biases are 1-D.
    """
    C, B, N, F_in = x.shape
    H = w1t.shape[0]
    F_out = w3t.shape[0]
    M = C * B * N

    row_tile = _choose_row_tile(M, max_row_tile)
    grid_m = pl.cdiv(M, row_tile)
    M_pad = grid_m * row_tile

    x2d = x.reshape(M, F_in)
    if M_pad != M:
        # Fallback only (ragged M); padded rows compute on zeros, sliced off.
        x2d = jnp.pad(x2d, ((0, M_pad - M), (0, 0)))

    # Biases as column vectors: broadcast across the lane (row) axis.
    b1_col = b1.reshape(H, 1)
    b2_col = b2.reshape(H, 1)
    b3_col = b3.reshape(F_out, 1)

    # VMEM budget with (8,128) minor-dim padding accounted for:
    #  - x tile (row_tile, F_in): lane dim pads to 128, double-buffered
    #  - out tile (F_out, row_tile): lane-dense, double-buffered
    #  - f32 hidden intermediates (~3 live (H, row_tile) slabs)
    #  - resident weights/biases (lane-padded, tiny)
    lane = 128
    est_bytes = 4 * (
        2 * row_tile * max(F_in, lane)
        + 2 * F_out * row_tile
        + 3 * H * row_tile
        + (H * max(F_in, lane) + H * max(H, lane) + F_out * max(H, lane))
        + (2 * H + F_out) * lane
    )
    vmem_limit = int(min(max(2 * est_bytes, 16 * 2**20), 48 * 2**20))

    vmem = pltpu.MemorySpace.VMEM

    out2d = pl.pallas_call(
        mlp_kernel,
        out_shape=jax.ShapeDtypeStruct((F_out, M_pad), x.dtype),
        grid=(grid_m,),
        in_specs=[
            pl.BlockSpec((row_tile, F_in), lambda i: (i, 0)),  # x rows (pipelined)
            pl.BlockSpec(memory_space=vmem),                   # W1 (resident once)
            pl.BlockSpec(memory_space=vmem),                   # b1
            pl.BlockSpec(memory_space=vmem),                   # W2
            pl.BlockSpec(memory_space=vmem),                   # b2
            pl.BlockSpec(memory_space=vmem),                   # W3
            pl.BlockSpec(memory_space=vmem),                   # b3
        ],
        # Lane-dense output: last dim (row_tile) is the 128-lane axis.
        out_specs=pl.BlockSpec((F_out, row_tile), lambda i: (0, i)),
        compiler_params=pltpu.CompilerParams(
            dimension_semantics=("parallel",),
            vmem_limit_bytes=vmem_limit,
        ),
    )(x2d, w1t, b1_col, w2t, b2_col, w3t, b3_col)

    if M_pad != M:
        out2d = out2d[:, :M]
    return out2d.T.reshape(C, B, N, F_out)


# ------------------------- deterministic param init ------------------------ #
def glorot_uniform(key, out_dim, in_dim, dtype=jnp.float32):
    # Matches the module's glorot(): stdv = sqrt(6 / (size(-2) + size(-1)))
    # on the torch (out, in) weight.
    stdv = math.sqrt(6.0 / (out_dim + in_dim))
    return jax.random.uniform(key, (out_dim, in_dim), dtype,
                              minval=-stdv, maxval=stdv)


if __name__ == "__main__":
    # MLP(num_layers=3, input_dim=16, hidden_dim=32, output_dim=8, use_bn=False,
    #     activate_func=relu)
    # TODO(synk): use_bn=True (BatchNorm1d) path not implemented; module default is False.
    num_classes, B, N = 2, 2, 8
    F_in, H, F_out = 16, 32, 8

    key = jax.random.PRNGKey(0)
    kx, k1, k2, k3 = jax.random.split(key, 4)

    x = jax.random.normal(kx, (num_classes, B, N, F_in), jnp.float32)

    # torch nn.Linear orientation: (out_dim, in_dim)
    w1t = glorot_uniform(k1, H, F_in)
    b1 = jnp.zeros((H,), jnp.float32)
    w2t = glorot_uniform(k2, H, H)
    b2 = jnp.zeros((H,), jnp.float32)
    w3t = glorot_uniform(k3, F_out, H)
    b3 = jnp.zeros((F_out,), jnp.float32)

    out = mlp_pallas(x, w1t, b1, w2t, b2, w3t, b3)
    out = jax.block_until_ready(out)

    # pure-JAX reference check (F.linear semantics: x @ W^T + b)
    def ref(x):
        h = jnp.maximum(x @ w1t.T + b1, 0.0)
        h = jnp.maximum(h @ w2t.T + b2, 0.0)
        return h @ w3t.T + b3

    expected = ref(x)
    assert out.shape == (num_classes, B, N, F_out)
    assert jnp.allclose(out, expected, atol=1e-5, rtol=1e-5)

    print("KERNEL_OK")
</pallas_src>

<mosaic_0001>
module attributes {stable_mosaic.version = 11 : i64} {
  func.func @mlp_kernel(%arg0: i32, %arg1: memref<32x16xf32, #tpu.memory_space<vmem>>, %arg2: memref<32x16xf32, #tpu.memory_space<vmem>>, %arg3: memref<32x1xf32, #tpu.memory_space<vmem>>, %arg4: memref<32x32xf32, #tpu.memory_space<vmem>>, %arg5: memref<32x1xf32, #tpu.memory_space<vmem>>, %arg6: memref<8x32xf32, #tpu.memory_space<vmem>>, %arg7: memref<8x1xf32, #tpu.memory_space<vmem>>, %arg8: memref<8x32xf32, #tpu.memory_space<vmem>>) attributes {dimension_semantics = [#tpu.dimension_semantics<parallel>], iteration_bounds = array<i64: 1>, scalar_prefetch = 0 : i64, scratch_operands = 0 : i64, tpu.core_type = #tpu.core_type<tc>, window_params = [{transform_indices = @transform_0, window_bounds = array<i64: 32, 16>}, {pipeline_mode = #tpu.pipeline_mode<synchronous>, transform_indices = @transform_1, window_bounds = array<i64: 32, 16>}, {pipeline_mode = #tpu.pipeline_mode<synchronous>, transform_indices = @transform_2, window_bounds = array<i64: 32, 1>}, {pipeline_mode = #tpu.pipeline_mode<synchronous>, transform_indices = @transform_3, window_bounds = array<i64: 32, 32>}, {pipeline_mode = #tpu.pipeline_mode<synchronous>, transform_indices = @transform_4, window_bounds = array<i64: 32, 1>}, {pipeline_mode = #tpu.pipeline_mode<synchronous>, transform_indices = @transform_5, window_bounds = array<i64: 8, 32>}, {pipeline_mode = #tpu.pipeline_mode<synchronous>, transform_indices = @transform_6, window_bounds = array<i64: 8, 1>}, {transform_indices = @transform_7, window_bounds = array<i64: 8, 32>}]} {
    %c0 = arith.constant 0 : index
    %c0_0 = arith.constant 0 : index
    %0 = vector.load %arg2[%c0, %c0_0] : memref<32x16xf32, #tpu.memory_space<vmem>>, vector<32x16xf32>
    %c0_1 = arith.constant 0 : index
    %c0_2 = arith.constant 0 : index
    %1 = vector.load %arg1[%c0_1, %c0_2] : memref<32x16xf32, #tpu.memory_space<vmem>>, vector<32x16xf32>
    %cst = arith.constant dense<0.000000e+00> : vector<32x32xf32>
    %2 = tpu.matmul %0, %1, %cst {dimension_numbers = #tpu.dot_dimension_numbers<[1], [1], [0], [0], [0, 0, 1, 0], [], []>} : vector<32x16xf32>, vector<32x16xf32>, vector<32x32xf32> -> vector<32x32xf32>
    %c0_3 = arith.constant 0 : index
    %c0_4 = arith.constant 0 : index
    %3 = vector.load %arg3[%c0_3, %c0_4] : memref<32x1xf32, #tpu.memory_space<vmem>>, vector<32x1xf32>
    %4 = vector.broadcast %3 : vector<32x1xf32> to vector<32x32xf32>
    %5 = arith.addf %2, %4 : vector<32x32xf32>
    %cst_5 = arith.constant 0.000000e+00 : f32
    %6 = vector.broadcast %cst_5 : f32 to vector<32x32xf32>
    %7 = arith.maximumf %5, %6 : vector<32x32xf32>
    %c0_6 = arith.constant 0 : index
    %c0_7 = arith.constant 0 : index
    %8 = vector.load %arg4[%c0_6, %c0_7] : memref<32x32xf32, #tpu.memory_space<vmem>>, vector<32x32xf32>
    %cst_8 = arith.constant dense<0.000000e+00> : vector<32x32xf32>
    %9 = tpu.matmul %8, %7, %cst_8 {dimension_numbers = #tpu.dot_dimension_numbers<[1], [0], [0], [1], [0, 0, 1, 1], [], []>} : vector<32x32xf32>, vector<32x32xf32>, vector<32x32xf32> -> vector<32x32xf32>
    %c0_9 = arith.constant 0 : index
    %c0_10 = arith.constant 0 : index
    %10 = vector.load %arg5[%c0_9, %c0_10] : memref<32x1xf32, #tpu.memory_space<vmem>>, vector<32x1xf32>
    %11 = vector.broadcast %10 : vector<32x1xf32> to vector<32x32xf32>
    %12 = arith.addf %9, %11 : vector<32x32xf32>
    %cst_11 = arith.constant 0.000000e+00 : f32
    %13 = vector.broadcast %cst_11 : f32 to vector<32x32xf32>
    %14 = arith.maximumf %12, %13 : vector<32x32xf32>
    %c0_12 = arith.constant 0 : index
    %c0_13 = arith.constant 0 : index
    %15 = vector.load %arg6[%c0_12, %c0_13] : memref<8x32xf32, #tpu.memory_space<vmem>>, vector<8x32xf32>
    %cst_14 = arith.constant dense<0.000000e+00> : vector<8x32xf32>
    %16 = tpu.matmul %15, %14, %cst_14 {dimension_numbers = #tpu.dot_dimension_numbers<[1], [0], [0], [1], [0, 0, 1, 1], [], []>} : vector<8x32xf32>, vector<32x32xf32>, vector<8x32xf32> -> vector<8x32xf32>
    %c0_15 = arith.constant 0 : index
    %c0_16 = arith.constant 0 : index
    %17 = vector.load %arg7[%c0_15, %c0_16] : memref<8x1xf32, #tpu.memory_space<vmem>>, vector<8x1xf32>
    %18 = vector.broadcast %17 : vector<8x1xf32> to vector<8x32xf32>
    %19 = arith.addf %16, %18 : vector<8x32xf32>
    %c0_17 = arith.constant 0 : index
    %c0_18 = arith.constant 0 : index
    %20 = vector.load %arg8[%c0_17, %c0_18] : memref<8x32xf32, #tpu.memory_space<vmem>>, vector<8x32xf32>
    tpu.vector_store %arg8[%c0_17, %c0_18], %19 {strides = array<i32>} : memref<8x32xf32, #tpu.memory_space<vmem>>, vector<8x32xf32>,
    return
  }
  func.func @transform_0(%arg0: i32) -> (i32, i32) {
    %c0_i32 = arith.constant 0 : i32
    %c0_i32_0 = arith.constant 0 : i32
    return %arg0, %c0_i32 : i32, i32
  }
  func.func @transform_1(%arg0: i32) -> (i32, i32) {
    %c0_i32 = arith.constant 0 : i32
    %c0_i32_0 = arith.constant 0 : i32
    %c0_i32_1 = arith.constant 0 : i32
    return %c0_i32, %c0_i32_0 : i32, i32
  }
  func.func @transform_2(%arg0: i32) -> (i32, i32) {
    %c0_i32 = arith.constant 0 : i32
    %c0_i32_0 = arith.constant 0 : i32
    %c0_i32_1 = arith.constant 0 : i32
    return %c0_i32, %c0_i32_0 : i32, i32
  }
  func.func @transform_3(%arg0: i32) -> (i32, i32) {
    %c0_i32 = arith.constant 0 : i32
    %c0_i32_0 = arith.constant 0 : i32
    %c0_i32_1 = arith.constant 0 : i32
    return %c0_i32, %c0_i32_0 : i32, i32
  }
  func.func @transform_4(%arg0: i32) -> (i32, i32) {
    %c0_i32 = arith.constant 0 : i32
    %c0_i32_0 = arith.constant 0 : i32
    %c0_i32_1 = arith.constant 0 : i32
    return %c0_i32, %c0_i32_0 : i32, i32
  }
  func.func @transform_5(%arg0: i32) -> (i32, i32) {
    %c0_i32 = arith.constant 0 : i32
    %c0_i32_0 = arith.constant 0 : i32
    %c0_i32_1 = arith.constant 0 : i32
    return %c0_i32, %c0_i32_0 : i32, i32
  }
  func.func @transform_6(%arg0: i32) -> (i32, i32) {
    %c0_i32 = arith.constant 0 : i32
    %c0_i32_0 = arith.constant 0 : i32
    %c0_i32_1 = arith.constant 0 : i32
    return %c0_i32, %c0_i32_0 : i32, i32
  }
  func.func @transform_7(%arg0: i32) -> (i32, i32) {
    %c0_i32 = arith.constant 0 : i32
    %c0_i32_0 = arith.constant 0 : i32
    return %c0_i32, %arg0 : i32, i32
  }
}

</mosaic_0001>

<llo_original>
// kernel: tpu_custom_call.1
$region0: #{tpu_custom_call.1}
  #allocation0 [shape = 'u32[]', space=smem, size = 0x4, offset = 0x4, fixed_abs, tag = 'smem constant byte address 0x4 - core index']
  #allocation1 [shape = 'u32[72,128]{1,0:T(1,128)}', space=vmem, size = 0x9000, scoped, tag = 'internal scratch']
  %s0 = inlined_call_operand.vmem [shape: f32[32,16], index: 0, kind: input, shape index: {}]
  %s1 = inlined_call_operand.vmem [shape: f32[32,16], index: 1, kind: input, shape index: {}]
  %s2 = inlined_call_operand.vmem [shape: f32[32,1], index: 2, kind: input, shape index: {}]
  %s3 = inlined_call_operand.vmem [shape: f32[32,32], index: 3, kind: input, shape index: {}]
  %s4 = inlined_call_operand.vmem [shape: f32[32,1], index: 4, kind: input, shape index: {}]
  %s5 = inlined_call_operand.vmem [shape: f32[8,32], index: 5, kind: input, shape index: {}]
  %s6 = inlined_call_operand.vmem [shape: f32[8,1], index: 6, kind: input, shape index: {}]
  %s7 = inlined_call_operand.hbm [shape: f32[8,32], index: 7, kind: output, shape index: {}]
  %s8 = sld [smem:[#allocation0]]
  $region38: #{tpu_custom_call.1} parent=0
    _
  %s10 = ssub.s32 1, %s8
  %s11 = scalar_select 0, %s10, %s8
  $region1: #{tpu_custom_call.1} parent=0
    #allocation2 [shape = 'u8[4096]{0}', space=vmem, size = 0x1000, scoped, tag = 'output window, operand 0, single buffered']
    #allocation3 [shape = 's32[1]{0}', space=sflag, size = 0x4, scoped, tag = 'scoped memory for tpu_custom_call.1']
    %12 = vsyncpa [#allocation3], 0
    // Predicated region
    $region2: #{tpu_custom_call.1} parent=1 // pred_check
      _
    $region3: #{tpu_custom_call.1} parent=1 // pred_check_branch
      %14 = sbr.rel (0) target = $region5
    $region4: #{tpu_custom_call.1} parent=1 // pred_region
      _
    $region5: #{tpu_custom_call.1} parent=1 // pred_fallthru
      _
    // Predicated region
    $region6: #{tpu_custom_call.1} parent=1 // pred_check
      _
    $region7: #{tpu_custom_call.1} parent=1 // pred_check_branch
      %16 = sbr.rel (0) target = $region9
    $region8: #{tpu_custom_call.1} parent=1 // pred_region
      _
    $region9: #{tpu_custom_call.1} parent=1 // pred_fallthru
      _
    // Predicated region
    $region10: #{tpu_custom_call.1} parent=1 // pred_check
      _
    $region11: #{tpu_custom_call.1} parent=1 // pred_check_branch
      %18 = sbr.rel (0) target = $region13
    $region12: #{tpu_custom_call.1} parent=1 // pred_region
      _
    $region13: #{tpu_custom_call.1} parent=1 // pred_fallthru
      _
    // Predicated region
    $region14: #{tpu_custom_call.1} parent=1 // pred_check
      _
    $region15: #{tpu_custom_call.1} parent=1 // pred_check_branch
      %20 = sbr.rel (0) target = $region17
    $region16: #{tpu_custom_call.1} parent=1 // pred_region
      _
    $region17: #{tpu_custom_call.1} parent=1 // pred_fallthru
      _
    // Predicated region
    $region18: #{tpu_custom_call.1} parent=1 // pred_check
      _
    $region19: #{tpu_custom_call.1} parent=1 // pred_check_branch
      %22 = sbr.rel (0) target = $region21
    $region20: #{tpu_custom_call.1} parent=1 // pred_region
      _
    $region21: #{tpu_custom_call.1} parent=1 // pred_fallthru
      _
    // Predicated region
    $region22: #{tpu_custom_call.1} parent=1 // pred_check
      _
    $region23: #{tpu_custom_call.1} parent=1 // pred_check_branch
      %24 = sbr.rel (0) target = $region25
    $region24: #{tpu_custom_call.1} parent=1 // pred_region
      _
    $region25: #{tpu_custom_call.1} parent=1 // pred_fallthru
      _
    // Predicated region
    $region26: #{tpu_custom_call.1} parent=1 // pred_check
      _
    $region27: #{tpu_custom_call.1} parent=1 // pred_check_branch
      %26 = sbr.rel (0) target = $region29
    $region28: #{tpu_custom_call.1} parent=1 // pred_region
      _
    $region29: #{tpu_custom_call.1} parent=1 // pred_fallthru
      _
    %v27 = vld [vmem:[%s1] sm:$0xff]
    %v28 = vld [vmem:[%s1 + $0x8] sm:$0xff]
    %v29 = vld [vmem:[%s1 + $0x10] sm:$0xff]
    %v30 = vld [vmem:[%s1 + $0x18] sm:$0xff]
    %v31 = vld [vmem:[%s0] sm:$0xff]
    %v32 = vld [vmem:[%s0 + $0x8] sm:$0xff]
    %v33 = vld [vmem:[%s0 + $0x10] sm:$0xff]
    %v34 = vld [vmem:[%s0 + $0x18] sm:$0xff]
    %v35 = vld [vmem:[%s2] sm:$0xff]
    %v36 = vld [vmem:[%s2 + $0x8] sm:$0xff]
    %v37 = vld [vmem:[%s2 + $0x10] sm:$0xff]
    %v38 = vld [vmem:[%s2 + $0x18] sm:$0xff]
    %40 = vset.pattern.permute.xlu0 0
    %41 = vperm.xlu0 %40, %v35
    %v42 = vpop.permute.xlu0 %41
    %45 = vset.pattern.permute.xlu0 0
    %46 = vperm.xlu0 %45, %v36
    %v47 = vpop.permute.xlu0 %46
    %50 = vset.pattern.permute.xlu0 0
    %51 = vperm.xlu0 %50, %v37
    %v52 = vpop.permute.xlu0 %51
    %55 = vset.pattern.permute.xlu0 0
    %56 = vperm.xlu0 %55, %v38
    %v57 = vpop.permute.xlu0 %56
    %vm59 = vcmask 130048
    %v61 = vsel %vm59, %v27, 0
    %v64 = vsel %vm59, %v28, 0
    %v67 = vsel %vm59, %v29, 0
    %v70 = vsel %vm59, %v30, 0
    %v73 = vsel %vm59, %v31, 0
    %v76 = vsel %vm59, %v32, 0
    %v79 = vsel %vm59, %v33, 0
    %v82 = vsel %vm59, %v34, 0
    %84 = vmatpush.xpose.msra.mxu0 0.0
    %85 = vmatpush.xpose.msra.mxu0 0.0
    %86 = vmatpush.xpose.msra.mxu0 0.0
    %87 = vmatpush.xpose.msra.mxu0 0.0
    %88 = vmatpush.xpose.msra.mxu0 0.0
    %89 = vmatpush.xpose.msra.mxu0 0.0
    %90 = vmatpush.xpose.msra.mxu0 0.0
    %91 = vmatpush.xpose.msra.mxu0 0.0
    %92 = vmatpush.xpose.msra.mxu0 0.0
    %93 = vmatpush.xpose.msra.mxu0 0.0
    %94 = vmatpush.xpose.msra.mxu0 0.0
    %95 = vmatpush.xpose.msra.mxu0 0.0
    %96 = vmatpush.xpose.msra.mxu0 %v82
    %97 = vmatpush.xpose.msra.mxu0 %v79
    %98 = vmatpush.xpose.msra.mxu0 %v76
    %99 = vmatpush.xpose.msra.mxu0 %v73
    %100 = vmatmul.f32.gmra.mxu0 %v61
    %v101 = vpop.f32.mrf.mxu0
    %v102 = vadd.f32 %v42, %v101
    %103 = vmatmul.f32.gmra.mxu0 %v64
    %v104 = vpop.f32.mrf.mxu0
    %v105 = vadd.f32 %v47, %v104
    %106 = vmatmul.f32.gmra.mxu0 %v67
    %v107 = vpop.f32.mrf.mxu0
    %v108 = vadd.f32 %v52, %v107
    %109 = vmatmul.f32.gmra.mxu0 %v70
    %v110 = vpop.f32.mrf.mxu0
    %v111 = vadd.f32 %v57, %v110
    %112 = vdwg.mxu0
    %v113 = vmax.f32 %v102, 0.0
    %v114 = vmax.f32 %v105, 0.0
    %v115 = vmax.f32 %v108, 0.0
    %v116 = vmax.f32 %v111, 0.0
    %v117 = vld [vmem:[%s3] sm:$0xff]
    %v118 = vld [vmem:[%s3 + $0x8] sm:$0xff]
    %v119 = vld [vmem:[%s3 + $0x10] sm:$0xff]
    %v120 = vld [vmem:[%s3 + $0x18] sm:$0xff]
    %v121 = vld [vmem:[%s4] sm:$0xff]
    %v122 = vld [vmem:[%s4 + $0x8] sm:$0xff]
    %v123 = vld [vmem:[%s4 + $0x10] sm:$0xff]
    %v124 = vld [vmem:[%s4 + $0x18] sm:$0xff]
    %126 = vset.pattern.permute.xlu0 0
    %127 = vperm.xlu0 %126, %v121
    %v128 = vpop.permute.xlu0 %127
    %131 = vset.pattern.permute.xlu0 0
    %132 = vperm.xlu0 %131, %v122
    %v133 = vpop.permute.xlu0 %132
    %136 = vset.pattern.permute.xlu0 0
    %137 = vperm.xlu0 %136, %v123
    %v138 = vpop.permute.xlu0 %137
    %141 = vset.pattern.permute.xlu0 0
    %142 = vperm.xlu0 %141, %v124
    %v143 = vpop.permute.xlu0 %142
    %vm145 = vcmask 261120
    %v147 = vsel %vm145, %v117, 0
    %v150 = vsel %vm145, %v118, 0
    %v153 = vsel %vm145, %v119, 0
    %v156 = vsel %vm145, %v120, 0
    %158 = vmatpush.msra.mxu0 0.0
    %159 = vmatpush.msra.mxu0 0.0
    %160 = vmatpush.msra.mxu0 0.0
    %161 = vmatpush.msra.mxu0 0.0
    %162 = vmatpush.msra.mxu0 0.0
    %163 = vmatpush.msra.mxu0 0.0
    %164 = vmatpush.msra.mxu0 0.0
    %165 = vmatpush.msra.mxu0 0.0
    %166 = vmatpush.msra.mxu0 0.0
    %167 = vmatpush.msra.mxu0 0.0
    %168 = vmatpush.msra.mxu0 0.0
    %169 = vmatpush.msra.mxu0 0.0
    %170 = vmatpush.msra.mxu0 %v116
    %171 = vmatpush.msra.mxu0 %v115
    %172 = vmatpush.msra.mxu0 %v114
    %173 = vmatpush.msra.mxu0 %v113
    %174 = vmatmul.f32.gmra.mxu0 %v147
    %v175 = vpop.f32.mrf.mxu0
    %v176 = vadd.f32 %v128, %v175
    %177 = vmatmul.f32.gmra.mxu0 %v150
    %v178 = vpop.f32.mrf.mxu0
    %v179 = vadd.f32 %v133, %v178
    %180 = vmatmul.f32.gmra.mxu0 %v153
    %v181 = vpop.f32.mrf.mxu0
    %v182 = vadd.f32 %v138, %v181
    %183 = vmatmul.f32.gmra.mxu0 %v156
    %v184 = vpop.f32.mrf.mxu0
    %v185 = vadd.f32 %v143, %v184
    %186 = vdwg.mxu0
    %v187 = vmax.f32 %v176, 0.0
    %v188 = vmax.f32 %v179, 0.0
    %v189 = vmax.f32 %v182, 0.0
    %v190 = vmax.f32 %v185, 0.0
    %v191 = vld [vmem:[%s5] sm:$0xff]
    %v192 = vld [vmem:[%s6] sm:$0xff]
    %194 = vset.pattern.permute.xlu0 0
    %195 = vperm.xlu0 %194, %v192
    %v196 = vpop.permute.xlu0 %195
    %v199 = vsel %vm145, %v191, 0
    %201 = vmatpush.msra.mxu0 0.0
    %202 = vmatpush.msra.mxu0 0.0
    %203 = vmatpush.msra.mxu0 0.0
    %204 = vmatpush.msra.mxu0 0.0
    %205 = vmatpush.msra.mxu0 0.0
    %206 = vmatpush.msra.mxu0 0.0
    %207 = vmatpush.msra.mxu0 0.0
    %208 = vmatpush.msra.mxu0 0.0
    %209 = vmatpush.msra.mxu0 0.0
    %210 = vmatpush.msra.mxu0 0.0
    %211 = vmatpush.msra.mxu0 0.0
    %212 = vmatpush.msra.mxu0 0.0
    %213 = vmatpush.msra.mxu0 %v190
    %214 = vmatpush.msra.mxu0 %v189
    %215 = vmatpush.msra.mxu0 %v188
    %216 = vmatpush.msra.mxu0 %v187
    %217 = vmatmul.f32.gmra.mxu0 %v199
    %v218 = vpop.f32.mrf.mxu0
    %v219 = vadd.f32 %v196, %v218
    %220 = vdwg.mxu0
    %221 = vst.msk [vmem:[#allocation2] sm:$0xff] %vm145, %v219
    // Predicated region
    $region30: #{tpu_custom_call.1} parent=1 // pred_check
      _
    $region31: #{tpu_custom_call.1} parent=1 // pred_check_branch
      %223 = sbr.rel (0) target = $region33
    $region32: #{tpu_custom_call.1} parent=1 // pred_region
      %225 = vsyncadd [#allocation3], 0
      %s227 = sshll.u32 [#allocation2], 4
      %s228 = int_to_ptr.vmem [resolvable:$true] %s227
      %s229 = sshll.u32 %s7, 4
      %s230 = int_to_ptr.hbm [resolvable:$true] %s229
      %232 = dma.vmem_to_hbm [thread:$0]  %s228, 128, %s230, [#allocation3]
    $region33: #{tpu_custom_call.1} parent=1 // pred_fallthru
      _
    // Predicated region
    $region34: #{tpu_custom_call.1} parent=1 // pred_check
      _
    $region35: #{tpu_custom_call.1} parent=1 // pred_check_branch
      %234 = sbr.rel (0) target = $region37
    $region36: #{tpu_custom_call.1} parent=1 // pred_region
      %236 = dma.done [#allocation3], 128
    $region37: #{tpu_custom_call.1} parent=1 // pred_fallthru
      _
    %237 = vsyncpa [#allocation3], 1

</llo_original>
